<compile_context>
chip_gen: v5e
topology: v5e:2x2
jax: 0.10.0
libtpu: 0.0.40
codegen_flags: <defaults>
</compile_context>

<pallas_src>
import jax
import jax.numpy as jnp
from jax.experimental import pallas as pl
from jax.experimental.pallas import tpu as pltpu


_CHUNK_BYTES = 8 << 20       # ~8 MiB per DMA chunk
_SPLIT_MIN_BYTES = 4 << 20   # split into >= 2 chunks above this (v7x megacore)
_MAX_INFLIGHT = 4            # DMA ring depth per grid step
_MAX_CHUNKS = 64             # cap on statically unrolled DMA descriptors


def _whole_copy_kernel(x_hbm, o_hbm, sem):
    # Single HBM -> HBM DMA of the entire array.  No VMEM round trip.
    cp = pltpu.make_async_copy(x_hbm, o_hbm, sem)
    cp.start()
    cp.wait()


def _make_chunked_copy_kernel(per_step_chunks, ring):
    """Kernel issuing chunked HBM->HBM DMAs with a `ring`-deep in-flight window.

    per_step_chunks[s] is a list of static (row_start, row_size) tuples handled
    by grid step s.  Each grid step uses its own semaphore row, so the two
    steps are independent whether they run sequentially (v5e/v6e) or on the
    two v7x TensorCores.
    """
    n_steps = len(per_step_chunks)

    def _emit(step, x_hbm, o_hbm, sems):
        chunks = per_step_chunks[step]
        copies = []
        for c, (r0, sz) in enumerate(chunks):
            cp = pltpu.make_async_copy(
                x_hbm.at[pl.ds(r0, sz), :],
                o_hbm.at[pl.ds(r0, sz), :],
                sems.at[step, c % ring],
            )
            if c >= ring:
                copies[c - ring].wait()   # free this ring slot first
            cp.start()
            copies.append(cp)
        for cp in copies[max(0, len(copies) - ring):]:
            cp.wait()

    def kernel(x_hbm, o_hbm, sems):
        if n_steps == 1:
            _emit(0, x_hbm, o_hbm, sems)
        else:
            pid = pl.program_id(0)
            for s in range(n_steps):
                @pl.when(pid == s)
                def _(s=s):
                    _emit(s, x_hbm, o_hbm, sems)

    return kernel


def _lane_dense_2d(x):
    """Lane-dense (rows, cols) view with cols a multiple of 128, or None.

    If x.size is not a multiple of 128 no suffix of the shape can be either,
    so the caller falls back to a whole-array DMA (no vreg traffic -> lane
    density is irrelevant there).
    """
    size = x.size
    for cand in (4096, 2048, 1024, 512, 256, 128):
        if size % cand == 0:
            return x.reshape(size // cand, cand)
    return None


def _pallas_copy(x):
    itemsize = jnp.dtype(x.dtype).itemsize
    nbytes = x.size * itemsize
    cost = pl.CostEstimate(flops=0, transcendentals=0, bytes_accessed=2 * nbytes)

    x2d = _lane_dense_2d(x)

    # How many DMA chunks?  One for small / irregular tensors; otherwise at
    # least two (so v7x's two TensorCores both drive bandwidth) of roughly
    # _CHUNK_BYTES each, capped so the unrolled descriptor count stays small.
    if x2d is None or x2d.shape[0] < 2 or nbytes <= _SPLIT_MIN_BYTES:
        n_chunks = 1
    else:
        want = max(2, -(-nbytes // _CHUNK_BYTES))        # ceil division
        n_chunks = int(min(x2d.shape[0], want, _MAX_CHUNKS))

    if n_chunks == 1:
        # Single whole-array DMA on the original shape (no reshape needed).
        return pl.pallas_call(
            _whole_copy_kernel,
            out_shape=jax.ShapeDtypeStruct(x.shape, x.dtype),
            in_specs=[pl.BlockSpec(memory_space=pl.ANY)],
            out_specs=pl.BlockSpec(memory_space=pl.ANY),
            scratch_shapes=[pltpu.SemaphoreType.DMA(())],
            cost_estimate=cost,
        )(x)

    R, C = x2d.shape

    # Static row ranges of the chunks.
    base, rem = divmod(R, n_chunks)
    chunks, r0 = [], 0
    for i in range(n_chunks):
        sz = base + (1 if i < rem else 0)
        chunks.append((r0, sz))
        r0 += sz

    # Two "parallel" grid steps -> v7x megacore splits the DMA work; on
    # v5e/v6e the second step is just one more cheap sequential iteration.
    n_steps = 2
    per_step = [chunks[: n_chunks // 2], chunks[n_chunks // 2:]]
    ring = min(_MAX_INFLIGHT, max(len(c) for c in per_step))

    out2d = pl.pallas_call(
        _make_chunked_copy_kernel(per_step, ring),
        out_shape=jax.ShapeDtypeStruct((R, C), x.dtype),
        grid=(n_steps,),
        in_specs=[pl.BlockSpec(memory_space=pl.ANY)],
        out_specs=pl.BlockSpec(memory_space=pl.ANY),
        scratch_shapes=[pltpu.SemaphoreType.DMA((n_steps, ring))],
        compiler_params=pltpu.CompilerParams(
            dimension_semantics=("parallel",)),
        cost_estimate=cost,
    )(x2d)
    return out2d.reshape(x.shape)


def pass_through(x, materialize=True):
    """Identity forward pass (PassThrough.forward).

    materialize=False: true zero-cost identity (the module's semantics need no
                       HBM traffic at all; this is also the right path when the
                       input buffer is donated).
    materialize=True : explicit, distinct HBM copy via chunked HBM->HBM DMAs
                       (exercises the TPU kernel path; no VMEM round trip).
    """
    if not materialize:
        return x
    if x.size == 0:
        return x
    return _pallas_copy(x)


if __name__ == "__main__":
    key = jax.random.PRNGKey(0)

    # NCHW input, small shape consistent with the module: batch=2, channels=4,
    # spatial 16x16.
    x = jax.random.normal(key, (2, 4, 16, 16), dtype=jnp.float32)

    # True identity fast path (what PassThrough.forward really is).
    y_fast = pass_through(x, materialize=False)
    assert y_fast is x

    # Pallas kernel path — small tensor takes the single whole-array DMA route.
    y = pass_through(x, materialize=True)
    jax.block_until_ready(y)
    assert y.shape == x.shape
    assert y.dtype == x.dtype
    assert bool(jnp.all(y == x))

    # Irregular (non-128-divisible) shape — exercises the robust fallback.
    x_odd = jax.random.normal(key, (3, 5, 7), dtype=jnp.float32)
    y_odd = pass_through(x_odd, materialize=True)
    jax.block_until_ready(y_odd)
    assert bool(jnp.all(y_odd == x_odd))

    # 8 MiB tensor — exercises the chunked, 2-step "parallel" DMA route
    # (two ~4 MiB HBM->HBM chunks, one per grid step / v7x TensorCore).
    x_big = jax.random.normal(key, (32, 4, 128, 128), dtype=jnp.float32)
    y_big = pass_through(x_big, materialize=True)
    jax.block_until_ready(y_big)
    assert y_big.shape == x_big.shape
    assert bool(jnp.all(y_big == x_big))

    print("KERNEL_OK")
</pallas_src>

<mosaic_0001>
module attributes {stable_mosaic.version = 11 : i64} {
  func.func @_whole_copy_kernel(%arg0: memref<2x4x16x16xf32, #tpu.memory_space<any>>, %arg1: memref<2x4x16x16xf32, #tpu.memory_space<any>>, %arg2: memref<!tpu.dma_semaphore, #tpu.memory_space<semaphore_mem>>) attributes {dimension_semantics = [], scalar_prefetch = 0 : i64, scratch_operands = 1 : i64, tpu.core_type = #tpu.core_type<tc>} {
    tpu.enqueue_dma source(%arg0 : memref<2x4x16x16xf32, #tpu.memory_space<any>>) target(%arg1 : memref<2x4x16x16xf32, #tpu.memory_space<any>>) target_semaphore(%arg2 : memref<!tpu.dma_semaphore, #tpu.memory_space<semaphore_mem>>)
    tpu.wait_dma2 semaphore(%arg2 : memref<!tpu.dma_semaphore, #tpu.memory_space<semaphore_mem>>) src(%arg0 : memref<2x4x16x16xf32, #tpu.memory_space<any>>) dst(%arg1 : memref<2x4x16x16xf32, #tpu.memory_space<any>>)
    return
  }
}

</mosaic_0001>

<llo_original>
// kernel: tpu_custom_call.1
$region0: #{tpu_custom_call.1}
  #allocation0 [shape = 'u32[]', space=smem, size = 0x4, offset = 0x4, fixed_abs, tag = 'smem constant byte address 0x4 - core index']
  #allocation1 [shape = 'u32[72,128]{1,0:T(1,128)}', space=vmem, size = 0x9000, scoped, tag = 'internal scratch']
  #allocation2 [shape = 's32[1]{0}', space=sflag, size = 0x4, scoped, tag = 'scratch operand']
  #allocation3 [shape = 's32[]', space=sflag, size = 0x4, offset = 0, fixed_abs, tag = 'sflag constant byte address 0x0 - dummy sync flag']
  #allocation4 [shape = 'u32[0]{0}', space=smem, size = 0, offset = 0, fixed_abs, tag = 'smem constant byte address 0x0 - null']
  %s0 = inlined_call_operand.hbm [shape: f32[2,4,16,16], index: 0, kind: input, shape index: {}]
  %s1 = inlined_call_operand.hbm [shape: f32[2,4,16,16], index: 1, kind: output, shape index: {}]
  %s2 = sld [smem:[#allocation0]]
  $region2: #{tpu_custom_call.1} parent=0
    _
  %s4 = ssub.s32 1, %s2
  %s5 = scalar_select 0, %s4, %s2
  %s7 = sshll.u32 1, 14
  %s8 = sxor.u32 4294967295, %s7
  %s10 = sshll.u32 %s0, 4
  %s11 = int_to_ptr.hbm [resolvable:$true] %s10
  %s12 = sshll.u32 %s1, 4
  %s13 = int_to_ptr.hbm [resolvable:$true] %s12
  %16 = dma.general %s11, 2048, %s13, [#allocation2], [#allocation3], [#allocation4], 0, 0
  %s17 = smul.u32 2, 4
  %s18 = smul.u32 %s17, 16
  %s19 = smul.u32 %s18, 1
  %s20 = sshll.u32 %s19, 4
  %21 = dma.done [#allocation2], %s20
  %22 = vsyncmov [#allocation2]
  %s23 = vpop.sfrf %22
  %p24 = scmp.eq.s32.totalorder %s23, 0
  %p25 = pneg %p24
  %27 = shalt.err (%p25)

</llo_original>
